<compile_context>
chip_gen: v5e
topology: v5e:2x2
jax: 0.10.0
libtpu: 0.0.40
codegen_flags: <defaults>
</compile_context>

<pallas_src>
import jax
import jax.numpy as jnp
from jax.experimental import pallas as pl
from jax.experimental.pallas import tpu as pltpu

# ---- small hyperparameters consistent with the module ----
B = 2
T = 128              # n_timepoints
C = 8                # n_channels
N_CLASSES = 4

F1 = 8               # n_filters_1
K1 = 9               # filter_size_time_1 (odd, <= n_timepoints)
DM = 2               # depth multiplier of DepthwiseConv2d(n_filters_1, 2, (1, C))
FOUT1 = F1 * DM      # 16
P1, S1 = 4, 4        # pool_size_time_1, pool_stride_time_1
T1 = (T - P1) // S1 + 1          # 32  (n_features_1)

F2 = 16              # n_filters_2  (== FOUT1, required by the 16-row slab packing)
K2 = 7               # filter_size_time_2 (odd)
P2, S2 = 8, 8        # pool_size_time_2, pool_stride_time_2
T2 = (T1 - P2) // S2 + 1         # 4   (n_features_2)

PAD1 = K1 // 2
T_PAD = T + 2 * PAD1             # 136
PAD2 = K2 // 2
T1_PAD = T1 + 2 * PAD2           # 38

BT = B * T                       # 256  (batch along lanes, stage 1)
BT1 = B * T1                     # 64   (batch along lanes, stage 2)
BT1P = B * T1_PAD                # 76   (padded pooled output, batch along lanes)

# packed weight-slab lane layout (bf16, FOUT1 rows x 256 lanes)
W1_COL = 0                       # W1_eff occupies lanes [0, 72)
B1_COL = K1 * C                  # 72   fused conv1/BN1/depthwise/BN2 bias column
W2_COL = 128                     # W2_eff occupies lanes [128, 240)  (tile-aligned start)
B2_COL = W2_COL + K2 * FOUT1     # 240  fused separable-conv/BN3 bias column
BC_COL = 244                     # classifier bias: row 0, lanes [244, 248)
WSLAB_W = 256

assert FOUT1 == F2               # both weight blocks share the 16-row slab


def _elu(v):
    # ELU(alpha=1); exp argument clamped so the unselected branch never overflows
    return jnp.where(v > 0, v, jnp.exp(jnp.minimum(v, 0.0)) - 1.0)


def eegnet_kernel(im1_ref, pool_ref, wslab_ref, wc_ref, out_ref):
    """Whole batch in one grid step; batch lives on the lane axis of every matmul."""
    # unpack the constant slab (static, in-tile slices -> cheap views)
    w1 = wslab_ref[:, W1_COL:W1_COL + K1 * C]                       # (16, 72)  bf16
    b1 = wslab_ref[:, B1_COL:B1_COL + 1].astype(jnp.float32)        # (16, 1)
    w2 = wslab_ref[:, W2_COL:W2_COL + K2 * FOUT1]                   # (16, 112) bf16
    b2 = wslab_ref[:, B2_COL:B2_COL + 1].astype(jnp.float32)        # (16, 1)
    bc = wslab_ref[0:1, BC_COL:BC_COL + N_CLASSES].astype(jnp.float32)  # (1, 4)

    # --- stage 1: temporal conv + BN1 + depthwise spatial conv + BN2 as one matmul ---
    h2 = jnp.dot(w1, im1_ref[...], preferred_element_type=jnp.float32) + b1   # (16, B*T)
    h2 = _elu(h2)

    # --- AvgPool1 as a block-diagonal matmul; zero columns give the zero padding
    #     needed by the separable conv, and keep the two batch items independent ---
    h3p = jnp.dot(h2.astype(jnp.bfloat16), pool_ref[...],
                  preferred_element_type=jnp.float32)                         # (16, B*T1_PAD)

    # --- stage-2 im2col (all slices inside one 128-lane tile), then
    #     separable conv (depthwise + pointwise) + BN3 as one matmul ---
    h3b = h3p.astype(jnp.bfloat16)                                            # (16, 76)
    im2 = jnp.concatenate(
        [jnp.concatenate(
            [h3b[:, b * T1_PAD + k: b * T1_PAD + k + T1] for b in range(B)], axis=1)
         for k in range(K2)], axis=0)                                         # (K2*FOUT1, B*T1)
    h4 = jnp.dot(w2, im2, preferred_element_type=jnp.float32) + b2            # (16, B*T1)
    h4 = _elu(h4)

    # --- classifier (AvgPool2 folded into wc) + batched LogSoftmax, single store ---
    rows = []
    for b in range(B):                                                        # tiny (4K MACs each)
        h4b = h4[:, b * T1:(b + 1) * T1]                                      # (16, 32)
        prod = wc_ref[...] * h4b[None, :, :]                                  # (4, 16, 32)
        rows.append(jnp.sum(jnp.sum(prod, axis=2), axis=1)[None, :])          # (1, 4)
    logits = jnp.concatenate(rows, axis=0) + bc                               # (B, 4)

    m = jnp.max(logits, axis=1, keepdims=True)
    z = logits - m
    lse = jnp.log(jnp.sum(jnp.exp(z), axis=1, keepdims=True))
    out_ref[...] = z - lse                                                    # one (B, N) store


@jax.jit
def eegnet_forward(x, wt, bn1_s, bn1_b, wd, bn2_s, bn2_b,
                   wdw, wpw, bn3_s, bn3_b, wc, bc):
    """x: (B, 1, T, C) NCHW float32 -> (B, N_CLASSES) log-probs (eval mode)."""
    f32 = jnp.float32
    xt = jnp.transpose(x[:, 0, :, :], (0, 2, 1)).astype(f32)           # (B, C, T)
    xpad = jnp.pad(xt, ((0, 0), (0, 0), (PAD1, PAD1)))                 # (B, C, T_PAD)

    # ---- wrapper-side im2col for the temporal conv, batch laid out along lanes ----
    # im1[k*C + c, b*T + t] = xpad[b, c, t + k]
    win = jnp.stack([xpad[:, :, k:k + T] for k in range(K1)], axis=1)  # (B, K1, C, T)
    im1 = jnp.transpose(win.reshape(B, K1 * C, T), (1, 0, 2)).reshape(K1 * C, BT)

    grp = jnp.arange(FOUT1) // DM                                      # group index per output ch

    # W1_eff[o, k*C + c] = s2[o]*s1[o//DM]*wt[o//DM, k]*wd[o, c]
    w1_eff = (bn2_s[:, None, None] * bn1_s[grp][:, None, None]
              * wt[grp][:, :, None] * wd[:, None, :]).reshape(FOUT1, K1 * C)
    b1_eff = bn2_s * bn1_b[grp] * jnp.sum(wd, axis=1) + bn2_b          # (FOUT1,)

    # W2_eff[f2, k*FOUT1 + o] = s3[f2]*wdw[o, k]*wpw[f2, o]
    w2_eff = (bn3_s[:, None, None] * wdw.T[None, :, :]
              * wpw[:, None, :]).reshape(F2, K2 * FOUT1)
    b2_eff = bn3_b                                                     # (F2,)

    # ---- block-diagonal AvgPool1 matrix with zero-padding columns per batch item ----
    t_idx = jnp.arange(T)[:, None]
    j_idx = jnp.arange(T1)[None, :]
    pool1 = (((t_idx >= j_idx * S1) & (t_idx < j_idx * S1 + P1)).astype(f32) / P1)   # (T, T1)
    pool_big = jnp.zeros((BT, BT1P), f32)
    for b in range(B):
        pool_big = pool_big.at[b * T:(b + 1) * T,
                               b * T1_PAD + PAD2: b * T1_PAD + PAD2 + T1].set(pool1)

    # ---- AvgPool2 folded into the classifier weight: Wc_eff[n,f,t] = sum_j wc[n,f,j]*pool2[t,j]
    tt = jnp.arange(T1)[:, None]
    jj = jnp.arange(T2)[None, :]
    pool2 = (((tt >= jj * S2) & (tt < jj * S2 + P2)).astype(f32) / P2)   # (T1, T2)
    wc_eff = jnp.einsum('nfj,tj->nft', wc, pool2)                        # (N, F2, T1)

    # ---- pack all small constants into one lane-tile-aligned bf16 slab ----
    wslab = jnp.zeros((FOUT1, WSLAB_W), f32)
    wslab = wslab.at[:, W1_COL:W1_COL + K1 * C].set(w1_eff)
    wslab = wslab.at[:, B1_COL].set(b1_eff)
    wslab = wslab.at[:, W2_COL:W2_COL + K2 * FOUT1].set(w2_eff)
    wslab = wslab.at[:, B2_COL].set(b2_eff)
    wslab = wslab.at[0, BC_COL:BC_COL + N_CLASSES].set(bc)
    wslab = wslab.astype(jnp.bfloat16)

    out = pl.pallas_call(
        eegnet_kernel,
        out_shape=jax.ShapeDtypeStruct((B, N_CLASSES), jnp.float32),
        grid=(1,),
        in_specs=[
            pl.BlockSpec((K1 * C, BT), lambda i: (0, 0)),        # stage-1 im2col (bf16)
            pl.BlockSpec((BT, BT1P), lambda i: (0, 0)),          # block-diag pool1 matrix (bf16)
            pl.BlockSpec((FOUT1, WSLAB_W), lambda i: (0, 0)),    # packed weight/bias slab (bf16)
            pl.BlockSpec((N_CLASSES, F2, T1), lambda i: (0, 0, 0)),  # classifier (pool2-folded, f32)
        ],
        out_specs=pl.BlockSpec((B, N_CLASSES), lambda i: (0, 0)),
        compiler_params=pltpu.CompilerParams(dimension_semantics=("arbitrary",)),
    )(im1.astype(jnp.bfloat16), pool_big.astype(jnp.bfloat16), wslab, wc_eff)
    return out


def reference_forward(x, wt, bn1_s, bn1_b, wd, bn2_s, bn2_b,
                      wdw, wpw, bn3_s, bn3_b, wc, bc):
    """Plain-JAX reference mirroring the PyTorch forward (eval mode)."""
    xp = jnp.pad(x, ((0, 0), (0, 0), (PAD1, PAD1), (0, 0)))                       # (B,1,T+2p,C)
    win = jnp.stack([xp[:, 0, k:k + T, :] for k in range(K1)], axis=1)            # (B,K1,T,C)
    h1 = jnp.einsum('fk,bktc->bftc', wt, win)                                     # (B,F1,T,C)
    h1 = h1 * bn1_s[None, :, None, None] + bn1_b[None, :, None, None]
    h1r = jnp.repeat(h1, DM, axis=1)                                              # (B,FOUT1,T,C)
    h2 = jnp.einsum('oc,botc->bot', wd, h1r)                                      # (B,FOUT1,T)
    h2 = h2 * bn2_s[None, :, None] + bn2_b[None, :, None]
    h2 = jax.nn.elu(h2)
    pooled1 = jnp.stack([h2[:, :, j * S1:j * S1 + P1].mean(axis=2)
                         for j in range(T1)], axis=2)                             # (B,FOUT1,T1)
    h3p = jnp.pad(pooled1, ((0, 0), (0, 0), (PAD2, PAD2)))
    wins2 = jnp.stack([h3p[:, :, k:k + T1] for k in range(K2)], axis=1)           # (B,K2,FOUT1,T1)
    hd = jnp.einsum('ok,bkot->bot', wdw, wins2)                                   # depthwise time conv
    hp = jnp.einsum('fo,bot->bft', wpw, hd)                                       # pointwise 1x1
    hp = hp * bn3_s[None, :, None] + bn3_b[None, :, None]
    hp = jax.nn.elu(hp)
    pooled2 = jnp.stack([hp[:, :, j * S2:j * S2 + P2].mean(axis=2)
                         for j in range(T2)], axis=2)                             # (B,F2,T2)
    logits = jnp.einsum('nfj,bfj->bn', wc, pooled2) + bc[None, :]
    return jax.nn.log_softmax(logits, axis=1)


if __name__ == "__main__":
    key = jax.random.PRNGKey(0)
    keys = jax.random.split(key, 13)

    x = jax.random.normal(keys[0], (B, 1, T, C), dtype=jnp.float32)

    # deterministic synthetic parameters (xavier/kaiming-like scales; not a checkpoint)
    wt = jax.random.normal(keys[1], (F1, K1), jnp.float32) * (2.0 / (F1 * K1)) ** 0.5
    wd = jax.random.normal(keys[2], (FOUT1, C), jnp.float32) * (2.0 / C) ** 0.5
    wdw = jax.random.normal(keys[3], (FOUT1, K2), jnp.float32) * (2.0 / K2) ** 0.5
    wpw = jax.random.normal(keys[4], (F2, FOUT1), jnp.float32) * (2.0 / FOUT1) ** 0.5
    wc_raw = jax.random.normal(keys[5], (N_CLASSES, F2, T2), jnp.float32) * 0.2
    bc = jax.random.normal(keys[6], (N_CLASSES,), jnp.float32) * 0.1

    # Conv2dNormWeight: renorm each output filter to L2 norm <= 0.5
    norms = jnp.sqrt(jnp.sum(wc_raw ** 2, axis=(1, 2), keepdims=True))
    wc = wc_raw * jnp.minimum(1.0, 0.5 / jnp.maximum(norms, 1e-12))

    # BatchNorm (eval mode): folded per-channel scale/shift from running stats
    bn1_s = 1.0 + 0.1 * jax.random.normal(keys[7], (F1,), jnp.float32)
    bn1_b = 0.05 * jax.random.normal(keys[8], (F1,), jnp.float32)
    bn2_s = 1.0 + 0.1 * jax.random.normal(keys[9], (FOUT1,), jnp.float32)
    bn2_b = 0.05 * jax.random.normal(keys[10], (FOUT1,), jnp.float32)
    bn3_s = 1.0 + 0.1 * jax.random.normal(keys[11], (F2,), jnp.float32)
    bn3_b = 0.05 * jax.random.normal(keys[12], (F2,), jnp.float32)

    out = eegnet_forward(x, wt, bn1_s, bn1_b, wd, bn2_s, bn2_b,
                         wdw, wpw, bn3_s, bn3_b, wc, bc)
    out = jax.block_until_ready(out)

    ref = reference_forward(x, wt, bn1_s, bn1_b, wd, bn2_s, bn2_b,
                            wdw, wpw, bn3_s, bn3_b, wc, bc)
    ref = jax.block_until_ready(ref)

    assert out.shape == (B, N_CLASSES)
    assert bool(jnp.allclose(out, ref, atol=5e-2, rtol=5e-2)), (
        f"mismatch: max abs diff = {float(jnp.max(jnp.abs(out - ref)))}")
    print("KERNEL_OK")
</pallas_src>

<mosaic_0001>
module attributes {stable_mosaic.version = 11 : i64} {
  func.func @eegnet_kernel(%arg0: i32, %arg1: memref<72x256xbf16, #tpu.memory_space<vmem>>, %arg2: memref<256x76xbf16, #tpu.memory_space<vmem>>, %arg3: memref<16x256xbf16, #tpu.memory_space<vmem>>, %arg4: memref<4x16x32xf32, #tpu.memory_space<vmem>>, %arg5: memref<2x4xf32, #tpu.memory_space<vmem>>) attributes {dimension_semantics = [#tpu.dimension_semantics<arbitrary>], iteration_bounds = array<i64: 1>, scalar_prefetch = 0 : i64, scratch_operands = 0 : i64, tpu.core_type = #tpu.core_type<tc>, window_params = [{pipeline_mode = #tpu.pipeline_mode<synchronous>, transform_indices = @transform_0, window_bounds = array<i64: 72, 256>}, {pipeline_mode = #tpu.pipeline_mode<synchronous>, transform_indices = @transform_1, window_bounds = array<i64: 256, 76>}, {pipeline_mode = #tpu.pipeline_mode<synchronous>, transform_indices = @transform_2, window_bounds = array<i64: 16, 256>}, {pipeline_mode = #tpu.pipeline_mode<synchronous>, transform_indices = @transform_3, window_bounds = array<i64: 4, 16, 32>}, {pipeline_mode = #tpu.pipeline_mode<synchronous>, transform_indices = @transform_4, window_bounds = array<i64: 2, 4>}]} {
    %c0 = arith.constant 0 : index
    %c0_0 = arith.constant 0 : index
    %0 = vector.load %arg3[%c0, %c0_0] : memref<16x256xbf16, #tpu.memory_space<vmem>>, vector<16x72xbf16>
    %c0_1 = arith.constant 0 : index
    %c72 = arith.constant 72 : index
    %1 = vector.load %arg3[%c0_1, %c72] : memref<16x256xbf16, #tpu.memory_space<vmem>>, vector<16x1xbf16>
    %2 = arith.extf %1 : vector<16x1xbf16> to vector<16x1xf32>
    %c0_2 = arith.constant 0 : index
    %c128 = arith.constant 128 : index
    %3 = vector.load %arg3[%c0_2, %c128] : memref<16x256xbf16, #tpu.memory_space<vmem>>, vector<16x112xbf16>
    %c0_3 = arith.constant 0 : index
    %c240 = arith.constant 240 : index
    %4 = vector.load %arg3[%c0_3, %c240] : memref<16x256xbf16, #tpu.memory_space<vmem>>, vector<16x1xbf16>
    %5 = arith.extf %4 : vector<16x1xbf16> to vector<16x1xf32>
    %c0_4 = arith.constant 0 : index
    %c244 = arith.constant 244 : index
    %6 = vector.load %arg3[%c0_4, %c244] : memref<16x256xbf16, #tpu.memory_space<vmem>>, vector<1x4xbf16>
    %7 = arith.extf %6 : vector<1x4xbf16> to vector<1x4xf32>
    %c0_5 = arith.constant 0 : index
    %c0_6 = arith.constant 0 : index
    %8 = vector.load %arg1[%c0_5, %c0_6] : memref<72x256xbf16, #tpu.memory_space<vmem>>, vector<72x256xbf16>
    %cst = arith.constant dense<0.000000e+00> : vector<16x256xf32>
    %9 = tpu.matmul %0, %8, %cst {dimension_numbers = #tpu.dot_dimension_numbers<[1], [0], [0], [1], [0, 0, 1, 1], [], []>} : vector<16x72xbf16>, vector<72x256xbf16>, vector<16x256xf32> -> vector<16x256xf32>
    %10 = vector.broadcast %2 : vector<16x1xf32> to vector<16x256xf32>
    %11 = arith.addf %9, %10 : vector<16x256xf32>
    %cst_7 = arith.constant 0.000000e+00 : f32
    %12 = vector.broadcast %cst_7 : f32 to vector<16x256xf32>
    %13 = arith.cmpf ogt, %11, %12 : vector<16x256xf32>
    %cst_8 = arith.constant 0.000000e+00 : f32
    %14 = vector.broadcast %cst_8 : f32 to vector<16x256xf32>
    %15 = arith.minimumf %11, %14 : vector<16x256xf32>
    %16 = math.exp %15 : vector<16x256xf32>
    %cst_9 = arith.constant 1.000000e+00 : f32
    %17 = vector.broadcast %cst_9 : f32 to vector<16x256xf32>
    %18 = arith.subf %16, %17 : vector<16x256xf32>
    %19 = arith.select %13, %11, %18 : vector<16x256xi1>, vector<16x256xf32>
    %20 = arith.truncf %19 : vector<16x256xf32> to vector<16x256xbf16>
    %c0_10 = arith.constant 0 : index
    %c0_11 = arith.constant 0 : index
    %21 = vector.load %arg2[%c0_10, %c0_11] : memref<256x76xbf16, #tpu.memory_space<vmem>>, vector<256x76xbf16>
    %cst_12 = arith.constant dense<0.000000e+00> : vector<16x76xf32>
    %22 = tpu.matmul %20, %21, %cst_12 {dimension_numbers = #tpu.dot_dimension_numbers<[1], [0], [0], [1], [0, 0, 1, 1], [], []>} : vector<16x256xbf16>, vector<256x76xbf16>, vector<16x76xf32> -> vector<16x76xf32>
    %23 = arith.truncf %22 : vector<16x76xf32> to vector<16x76xbf16>
    %24 = vector.extract_strided_slice %23 {offsets = [0, 0], sizes = [16, 32], strides = [1, 1]} : vector<16x76xbf16> to vector<16x32xbf16>
    %25 = vector.extract_strided_slice %23 {offsets = [0, 38], sizes = [16, 32], strides = [1, 1]} : vector<16x76xbf16> to vector<16x32xbf16>
    %26 = tpu.concatenate %24, %25 in 1 : vector<16x32xbf16>, vector<16x32xbf16> -> vector<16x64xbf16>
    %27 = vector.extract_strided_slice %23 {offsets = [0, 1], sizes = [16, 32], strides = [1, 1]} : vector<16x76xbf16> to vector<16x32xbf16>
    %28 = vector.extract_strided_slice %23 {offsets = [0, 39], sizes = [16, 32], strides = [1, 1]} : vector<16x76xbf16> to vector<16x32xbf16>
    %29 = tpu.concatenate %27, %28 in 1 : vector<16x32xbf16>, vector<16x32xbf16> -> vector<16x64xbf16>
    %30 = vector.extract_strided_slice %23 {offsets = [0, 2], sizes = [16, 32], strides = [1, 1]} : vector<16x76xbf16> to vector<16x32xbf16>
    %31 = vector.extract_strided_slice %23 {offsets = [0, 40], sizes = [16, 32], strides = [1, 1]} : vector<16x76xbf16> to vector<16x32xbf16>
    %32 = tpu.concatenate %30, %31 in 1 : vector<16x32xbf16>, vector<16x32xbf16> -> vector<16x64xbf16>
    %33 = vector.extract_strided_slice %23 {offsets = [0, 3], sizes = [16, 32], strides = [1, 1]} : vector<16x76xbf16> to vector<16x32xbf16>
    %34 = vector.extract_strided_slice %23 {offsets = [0, 41], sizes = [16, 32], strides = [1, 1]} : vector<16x76xbf16> to vector<16x32xbf16>
    %35 = tpu.concatenate %33, %34 in 1 : vector<16x32xbf16>, vector<16x32xbf16> -> vector<16x64xbf16>
    %36 = vector.extract_strided_slice %23 {offsets = [0, 4], sizes = [16, 32], strides = [1, 1]} : vector<16x76xbf16> to vector<16x32xbf16>
    %37 = vector.extract_strided_slice %23 {offsets = [0, 42], sizes = [16, 32], strides = [1, 1]} : vector<16x76xbf16> to vector<16x32xbf16>
    %38 = tpu.concatenate %36, %37 in 1 : vector<16x32xbf16>, vector<16x32xbf16> -> vector<16x64xbf16>
    %39 = vector.extract_strided_slice %23 {offsets = [0, 5], sizes = [16, 32], strides = [1, 1]} : vector<16x76xbf16> to vector<16x32xbf16>
    %40 = vector.extract_strided_slice %23 {offsets = [0, 43], sizes = [16, 32], strides = [1, 1]} : vector<16x76xbf16> to vector<16x32xbf16>
    %41 = tpu.concatenate %39, %40 in 1 : vector<16x32xbf16>, vector<16x32xbf16> -> vector<16x64xbf16>
    %42 = vector.extract_strided_slice %23 {offsets = [0, 6], sizes = [16, 32], strides = [1, 1]} : vector<16x76xbf16> to vector<16x32xbf16>
    %43 = vector.extract_strided_slice %23 {offsets = [0, 44], sizes = [16, 32], strides = [1, 1]} : vector<16x76xbf16> to vector<16x32xbf16>
    %44 = tpu.concatenate %42, %43 in 1 : vector<16x32xbf16>, vector<16x32xbf16> -> vector<16x64xbf16>
    %45 = tpu.concatenate %26, %29, %32, %35, %38, %41, %44 in 0 : vector<16x64xbf16>, vector<16x64xbf16>, vector<16x64xbf16>, vector<16x64xbf16>, vector<16x64xbf16>, vector<16x64xbf16>, vector<16x64xbf16> -> vector<112x64xbf16>
    %cst_13 = arith.constant dense<0.000000e+00> : vector<16x64xf32>
    %46 = tpu.matmul %3, %45, %cst_13 {dimension_numbers = #tpu.dot_dimension_numbers<[1], [0], [0], [1], [0, 0, 1, 1], [], []>} : vector<16x112xbf16>, vector<112x64xbf16>, vector<16x64xf32> -> vector<16x64xf32>
    %47 = vector.broadcast %5 : vector<16x1xf32> to vector<16x64xf32>
    %48 = arith.addf %46, %47 : vector<16x64xf32>
    %cst_14 = arith.constant 0.000000e+00 : f32
    %49 = vector.broadcast %cst_14 : f32 to vector<16x64xf32>
    %50 = arith.cmpf ogt, %48, %49 : vector<16x64xf32>
    %cst_15 = arith.constant 0.000000e+00 : f32
    %51 = vector.broadcast %cst_15 : f32 to vector<16x64xf32>
    %52 = arith.minimumf %48, %51 : vector<16x64xf32>
    %53 = math.exp %52 : vector<16x64xf32>
    %cst_16 = arith.constant 1.000000e+00 : f32
    %54 = vector.broadcast %cst_16 : f32 to vector<16x64xf32>
    %55 = arith.subf %53, %54 : vector<16x64xf32>
    %56 = arith.select %50, %48, %55 : vector<16x64xi1>, vector<16x64xf32>
    %57 = vector.extract_strided_slice %56 {offsets = [0, 0], sizes = [16, 32], strides = [1, 1]} : vector<16x64xf32> to vector<16x32xf32>
    %c0_17 = arith.constant 0 : index
    %c0_18 = arith.constant 0 : index
    %c0_19 = arith.constant 0 : index
    %58 = vector.load %arg4[%c0_17, %c0_18, %c0_19] : memref<4x16x32xf32, #tpu.memory_space<vmem>>, vector<4x16x32xf32>
    %59 = vector.shape_cast %57 : vector<16x32xf32> to vector<1x16x32xf32>
    %60 = vector.broadcast %59 : vector<1x16x32xf32> to vector<4x16x32xf32>
    %61 = arith.mulf %58, %60 : vector<4x16x32xf32>
    %cst_20 = arith.constant dense<0.000000e+00> : vector<4x16xf32>
    %62 = vector.multi_reduction <add>, %61, %cst_20 [2] : vector<4x16x32xf32> to vector<4x16xf32>
    %cst_21 = arith.constant dense<0.000000e+00> : vector<4xf32>
    %63 = vector.multi_reduction <add>, %62, %cst_21 [1] : vector<4x16xf32> to vector<4xf32>
    %64 = vector.shape_cast %63 : vector<4xf32> to vector<1x4xf32>
    %65 = vector.extract_strided_slice %56 {offsets = [0, 32], sizes = [16, 32], strides = [1, 1]} : vector<16x64xf32> to vector<16x32xf32>
    %c0_22 = arith.constant 0 : index
    %c0_23 = arith.constant 0 : index
    %c0_24 = arith.constant 0 : index
    %66 = vector.load %arg4[%c0_22, %c0_23, %c0_24] : memref<4x16x32xf32, #tpu.memory_space<vmem>>, vector<4x16x32xf32>
    %67 = vector.shape_cast %65 : vector<16x32xf32> to vector<1x16x32xf32>
    %68 = vector.broadcast %67 : vector<1x16x32xf32> to vector<4x16x32xf32>
    %69 = arith.mulf %66, %68 : vector<4x16x32xf32>
    %cst_25 = arith.constant dense<0.000000e+00> : vector<4x16xf32>
    %70 = vector.multi_reduction <add>, %69, %cst_25 [2] : vector<4x16x32xf32> to vector<4x16xf32>
    %cst_26 = arith.constant dense<0.000000e+00> : vector<4xf32>
    %71 = vector.multi_reduction <add>, %70, %cst_26 [1] : vector<4x16xf32> to vector<4xf32>
    %72 = vector.shape_cast %71 : vector<4xf32> to vector<1x4xf32>
    %73 = tpu.concatenate %64, %72 in 0 : vector<1x4xf32>, vector<1x4xf32> -> vector<2x4xf32>
    %74 = vector.broadcast %7 : vector<1x4xf32> to vector<2x4xf32>
    %75 = arith.addf %73, %74 : vector<2x4xf32>
    %cst_27 = arith.constant dense<0xFF800000> : vector<2xf32>
    %76 = vector.multi_reduction <maximumf>, %75, %cst_27 [1] : vector<2x4xf32> to vector<2xf32>
    %77 = vector.shape_cast %76 : vector<2xf32> to vector<2x1xf32>
    %78 = vector.broadcast %77 : vector<2x1xf32> to vector<2x4xf32>
    %79 = arith.subf %75, %78 : vector<2x4xf32>
    %80 = math.exp %79 : vector<2x4xf32>
    %cst_28 = arith.constant dense<0.000000e+00> : vector<2xf32>
    %81 = vector.multi_reduction <add>, %80, %cst_28 [1] : vector<2x4xf32> to vector<2xf32>
    %82 = vector.shape_cast %81 : vector<2xf32> to vector<2x1xf32>
    %83 = math.log %82 : vector<2x1xf32>
    %84 = vector.broadcast %83 : vector<2x1xf32> to vector<2x4xf32>
    %85 = arith.subf %79, %84 : vector<2x4xf32>
    %c0_29 = arith.constant 0 : index
    %c0_30 = arith.constant 0 : index
    %86 = vector.load %arg5[%c0_29, %c0_30] : memref<2x4xf32, #tpu.memory_space<vmem>>, vector<2x4xf32>
    tpu.vector_store %arg5[%c0_29, %c0_30], %85 {strides = array<i32>} : memref<2x4xf32, #tpu.memory_space<vmem>>, vector<2x4xf32>,
    return
  }
  func.func @transform_0(%arg0: i32) -> (i32, i32) {
    %c0_i32 = arith.constant 0 : i32
    %c0_i32_0 = arith.constant 0 : i32
    %c0_i32_1 = arith.constant 0 : i32
    return %c0_i32, %c0_i32_0 : i32, i32
  }
  func.func @transform_1(%arg0: i32) -> (i32, i32) {
    %c0_i32 = arith.constant 0 : i32
    %c0_i32_0 = arith.constant 0 : i32
    %c0_i32_1 = arith.constant 0 : i32
    return %c0_i32, %c0_i32_0 : i32, i32
  }
  func.func @transform_2(%arg0: i32) -> (i32, i32) {
    %c0_i32 = arith.constant 0 : i32
    %c0_i32_0 = arith.constant 0 : i32
    %c0_i32_1 = arith.constant 0 : i32
    return %c0_i32, %c0_i32_0 : i32, i32
  }
  func.func @transform_3(%arg0: i32) -> (i32, i32, i32) {
    %c0_i32 = arith.constant 0 : i32
    %c0_i32_0 = arith.constant 0 : i32
    %c0_i32_1 = arith.constant 0 : i32
    %c0_i32_2 = arith.constant 0 : i32
    return %c0_i32, %c0_i32_0, %c0_i32_1 : i32, i32, i32
  }
  func.func @transform_4(%arg0: i32) -> (i32, i32) {
    %c0_i32 = arith.constant 0 : i32
    %c0_i32_0 = arith.constant 0 : i32
    %c0_i32_1 = arith.constant 0 : i32
    return %c0_i32, %c0_i32_0 : i32, i32
  }
}

</mosaic_0001>

<llo_original>
// kernel: mul.11
$region0: #{mul.11}
  #allocation0 [shape = 's32[1]{0}', space=sflag, size = 0x4, scoped, tag = 'scoped memory for mul.11']
  %s0 = inlined_call_operand.vmem [shape: f32[16], index: 0, kind: input, shape index: {}]
  %s1 = inlined_call_operand.vmem [shape: f32[16], index: 1, kind: input, shape index: {}]
  %s2 = inlined_call_operand.vmem [shape: f32[16], index: 2, kind: output, shape index: {}]
  %v3 = vld [vmem:[%s0] sm:$0x1]
  %v4 = vld [vmem:[%s1] sm:$0x1]
  %5 = xla_tuple %v3, %v4
  %6 = xla_tuple %5
  %v7 = vmul.f32 %v3, %v4
  %8 = xla_tuple %v7
  %9 = vst [vmem:[%s2] sm:$0x1] %v7

// kernel: eegnet_forward.1
$region0: #{eegnet_forward.1}
  #allocation0 [shape = 'u32[]', space=smem, size = 0x4, offset = 0x4, fixed_abs, tag = 'smem constant byte address 0x4 - core index']
  #allocation1 [shape = 'u32[72,128]{1,0:T(1,128)}', space=vmem, size = 0x9000, scoped, tag = 'internal scratch']
  %s0 = inlined_call_operand.vmem [shape: bf16[72,256], index: 0, kind: input, shape index: {}]
  %s1 = inlined_call_operand.vmem [shape: bf16[256,76], index: 1, kind: input, shape index: {}]
  %s2 = inlined_call_operand.vmem [shape: bf16[16,256], index: 2, kind: input, shape index: {}]
  %s3 = inlined_call_operand.vmem [shape: f32[4,16,32], index: 3, kind: input, shape index: {}]
  %s4 = inlined_call_operand.hbm [shape: f32[2,4], index: 4, kind: output, shape index: {}]
  %s5 = sld [smem:[#allocation0]]
  $region26: #{eegnet_forward.1} parent=0
    _
  %s7 = ssub.s32 1, %s5
  %s8 = scalar_select 0, %s7, %s5
  $region1: #{eegnet_forward.1} parent=0
    #allocation2 [shape = 'u8[1024]{0}', space=vmem, size = 0x400, scoped, tag = 'output window, operand 0, single buffered']
    #allocation3 [shape = 's32[1]{0}', space=sflag, size = 0x4, scoped, tag = 'scoped memory for eegnet_forward.1']
    %9 = vsyncpa [#allocation3], 0
    // Predicated region
    $region2: #{eegnet_forward.1} parent=1 // pred_check
      _
    $region3: #{eegnet_forward.1} parent=1 // pred_check_branch
      %11 = sbr.rel (0) target = $region5
    $region4: #{eegnet_forward.1} parent=1 // pred_region
      _
    $region5: #{eegnet_forward.1} parent=1 // pred_fallthru
      _
    // Predicated region
    $region6: #{eegnet_forward.1} parent=1 // pred_check
      _
    $region7: #{eegnet_forward.1} parent=1 // pred_check_branch
      %13 = sbr.rel (0) target = $region9
    $region8: #{eegnet_forward.1} parent=1 // pred_region
      _
    $region9: #{eegnet_forward.1} parent=1 // pred_fallthru
      _
    // Predicated region
    $region10: #{eegnet_forward.1} parent=1 // pred_check
      _
    $region11: #{eegnet_forward.1} parent=1 // pred_check_branch
      %15 = sbr.rel (0) target = $region13
    $region12: #{eegnet_forward.1} parent=1 // pred_region
      _
    $region13: #{eegnet_forward.1} parent=1 // pred_fallthru
      _
    // Predicated region
    $region14: #{eegnet_forward.1} parent=1 // pred_check
      _
    $region15: #{eegnet_forward.1} parent=1 // pred_check_branch
      %17 = sbr.rel (0) target = $region17
    $region16: #{eegnet_forward.1} parent=1 // pred_region
      _
    $region17: #{eegnet_forward.1} parent=1 // pred_fallthru
      _
    %v19 = vld [vmem:[%s2] sm:$0xf]
    %v20 = vld [vmem:[%s2 + $0x8] sm:$0xf]
    %v21 = vunpack.c.l.bf16 %v19
    %v22 = vunpack.c.l.bf16 %v20
    %v23 = vld [vmem:[%s2 + $0x4] sm:$0xf]
    %v24 = vld [vmem:[%s2 + $0xc] sm:$0xf]
    %v25 = vunpack.c.l.bf16 %v23
    %v26 = vunpack.c.l.bf16 %v24
    %v27 = vld [vmem:[%s2 + $0x4] sm:$0x1]
    %v28 = vunpack.c.l.bf16 %v27
    %v29 = vld [vmem:[%s0] sm:$0xff]
    %v30 = vld [vmem:[%s0 + $0x8] sm:$0xff]
    %v31 = vld [vmem:[%s0 + $0x10] sm:$0xff]
    %v32 = vld [vmem:[%s0 + $0x18] sm:$0xff]
    %v33 = vld [vmem:[%s0 + $0x20] sm:$0xff]
    %v34 = vld [vmem:[%s0 + $0x28] sm:$0xff]
    %v35 = vld [vmem:[%s0 + $0x30] sm:$0xff]
    %v36 = vld [vmem:[%s0 + $0x38] sm:$0xff]
    %v37 = vld [vmem:[%s0 + $0x40] sm:$0xff]
    %39 = vset.pattern.permute.xlu0 72
    %40 = vperm.xlu0 %39, %v21
    %v41 = vpop.permute.xlu0 %40
    %44 = vset.pattern.permute.xlu0 72
    %45 = vperm.xlu0 %44, %v22
    %v46 = vpop.permute.xlu0 %45
    %v50 = vunpack.c.l.b16 %v19
    %v51 = vunpack.c.l.b16 %v20
    %v52 = vpack.c.b16 %v51, %v50
    %v62 = vunpack.c.l.b16 %v29
    %v63 = vunpack.c.h.b16 %v29
    %v64 = vunpack.c.l.b16 %v30
    %v65 = vunpack.c.h.b16 %v30
    %v66 = vunpack.c.l.b16 %v31
    %v67 = vunpack.c.h.b16 %v31
    %v68 = vunpack.c.l.b16 %v32
    %v69 = vunpack.c.h.b16 %v32
    %v70 = vunpack.c.l.b16 %v33
    %v71 = vunpack.c.h.b16 %v33
    %v72 = vunpack.c.l.b16 %v34
    %v73 = vunpack.c.h.b16 %v34
    %v74 = vunpack.c.l.b16 %v35
    %v75 = vunpack.c.h.b16 %v35
    %v76 = vunpack.c.l.b16 %v36
    %v77 = vunpack.c.h.b16 %v36
    %v78 = vunpack.c.l.b16 %v37
    %v79 = vunpack.c.h.b16 %v37
    %v80 = vpack.c.b16 %v64, %v62
    %v81 = vpack.c.b16 %v65, %v63
    %v82 = vpack.c.b16 %v68, %v66
    %v83 = vpack.c.b16 %v69, %v67
    %v84 = vpack.c.b16 %v72, %v70
    %v85 = vpack.c.b16 %v73, %v71
    %v86 = vpack.c.b16 %v76, %v74
    %v87 = vpack.c.b16 %v77, %v75
    %v88 = vpack.c.b16 %v78, %v78
    %v89 = vpack.c.b16 %v79, %v79
    %vm98 = vcmask 588800
    %v100 = vsel %vm98, %v52, 0
    %vm102 = vcmask 1043456
    %v104 = vsel %vm102, %v88, 0
    %v107 = vsel %vm102, %v89, 0
    %109 = vmatpush.bf16.msra.mxu0 0
    %110 = vmatpush.bf16.msra.mxu0 0
    %111 = vmatpush.bf16.msra.mxu0 0
    %112 = vmatpush.bf16.msra.mxu0 %v104
    %113 = vmatpush.bf16.msra.mxu0 %v86
    %114 = vmatpush.bf16.msra.mxu0 %v84
    %115 = vmatpush.bf16.msra.mxu0 %v82
    %116 = vmatpush.bf16.msra.mxu0 %v80
    %117 = vmatmul.bf16.gmra.mxu0 %v100
    %v118 = vpop.f32.mrf.mxu0
    %v119 = vadd.f32 %v41, %v118
    %v120 = vpop.f32.mrf.mxu0
    %v121 = vadd.f32 %v46, %v120
    %122 = vdwg.mxu0
    %123 = vmatpush.bf16.msra.mxu0 0
    %124 = vmatpush.bf16.msra.mxu0 0
    %125 = vmatpush.bf16.msra.mxu0 0
    %126 = vmatpush.bf16.msra.mxu0 %v107
    %127 = vmatpush.bf16.msra.mxu0 %v87
    %128 = vmatpush.bf16.msra.mxu0 %v85
    %129 = vmatpush.bf16.msra.mxu0 %v83
    %130 = vmatpush.bf16.msra.mxu0 %v81
    %131 = vmatmul.bf16.gmra.mxu0 %v100
    %v132 = vpop.f32.mrf.mxu0
    %v133 = vadd.f32 %v41, %v132
    %v134 = vpop.f32.mrf.mxu0
    %v135 = vadd.f32 %v46, %v134
    %136 = vdwg.mxu0
    %vm137 = vcmp.gt.f32.partialorder %v119, 0.0
    %vm138 = vcmp.gt.f32.partialorder %v133, 0.0
    %vm139 = vcmp.gt.f32.partialorder %v121, 0.0
    %vm140 = vcmp.gt.f32.partialorder %v135, 0.0
    %v141 = vmin.f32 %v119, 0.0
    %v142 = vmin.f32 %v133, 0.0
    %v143 = vmin.f32 %v121, 0.0
    %v144 = vmin.f32 %v135, 0.0
    %v145 = vmul.f32 %v141, 1.442695
    %v146 = vpow.pop %v145
    %v147 = vmul.f32 %v142, 1.442695
    %v148 = vpow.pop %v147
    %v149 = vmul.f32 %v143, 1.442695
    %v150 = vpow.pop %v149
    %v151 = vmul.f32 %v144, 1.442695
    %v152 = vpow.pop %v151
    %v153 = vsub.f32 %v146, 1.0
    %v154 = vsub.f32 %v148, 1.0
    %v155 = vsub.f32 %v150, 1.0
    %v156 = vsub.f32 %v152, 1.0
    %v157 = vsel %vm137, %v119, %v153
    %v158 = vsel %vm138, %v133, %v154
    %v159 = vsel %vm139, %v121, %v155
    %v160 = vsel %vm140, %v135, %v156
    %v161 = vpack.c.bf16 %v159, %v157
    %v162 = vpack.c.bf16 %v160, %v158
    %v163 = vld [vmem:[%s1] sm:$0xf]
    %v164 = vld [vmem:[%s1 + $0x4] sm:$0xf]
    %v165 = vld [vmem:[%s1 + $0x8] sm:$0xf]
    %v166 = vld [vmem:[%s1 + $0xc] sm:$0xf]
    %v167 = vld [vmem:[%s1 + $0x10] sm:$0xf]
    %v168 = vld [vmem:[%s1 + $0x14] sm:$0xf]
    %v169 = vld [vmem:[%s1 + $0x18] sm:$0xf]
    %v170 = vld [vmem:[%s1 + $0x1c] sm:$0xf]
    %v171 = vld [vmem:[%s1 + $0x20] sm:$0xf]
    %v172 = vld [vmem:[%s1 + $0x24] sm:$0xf]
    %v173 = vld [vmem:[%s1 + $0x28] sm:$0xf]
    %v174 = vld [vmem:[%s1 + $0x2c] sm:$0xf]
    %v175 = vld [vmem:[%s1 + $0x30] sm:$0xf]
    %v176 = vld [vmem:[%s1 + $0x34] sm:$0xf]
    %v177 = vld [vmem:[%s1 + $0x38] sm:$0xf]
    %v178 = vld [vmem:[%s1 + $0x3c] sm:$0xf]
    %v179 = vld [vmem:[%s1 + $0x40] sm:$0xf]
    %v180 = vld [vmem:[%s1 + $0x44] sm:$0xf]
    %v181 = vld [vmem:[%s1 + $0x48] sm:$0xf]
    %v182 = vld [vmem:[%s1 + $0x4c] sm:$0xf]
    %v183 = vld [vmem:[%s1 + $0x50] sm:$0xf]
    %v184 = vld [vmem:[%s1 + $0x54] sm:$0xf]
    %v185 = vld [vmem:[%s1 + $0x58] sm:$0xf]
    %v186 = vld [vmem:[%s1 + $0x5c] sm:$0xf]
    %v187 = vld [vmem:[%s1 + $0x60] sm:$0xf]
    %v188 = vld [vmem:[%s1 + $0x64] sm:$0xf]
    %v189 = vld [vmem:[%s1 + $0x68] sm:$0xf]
    %v190 = vld [vmem:[%s1 + $0x6c] sm:$0xf]
    %v191 = vld [vmem:[%s1 + $0x70] sm:$0xf]
    %v192 = vld [vmem:[%s1 + $0x74] sm:$0xf]
    %v193 = vld [vmem:[%s1 + $0x78] sm:$0xf]
    %v194 = vld [vmem:[%s1 + $0x7c] sm:$0xf]
    %v227 = vunpack.c.l.b16 %v163
    %v228 = vunpack.c.l.b16 %v164
    %v229 = vunpack.c.l.b16 %v165
    %v230 = vunpack.c.l.b16 %v166
    %v231 = vunpack.c.l.b16 %v167
    %v232 = vunpack.c.l.b16 %v168
    %v233 = vunpack.c.l.b16 %v169
    %v234 = vunpack.c.l.b16 %v170
    %v235 = vunpack.c.l.b16 %v171
    %v236 = vunpack.c.l.b16 %v172
    %v237 = vunpack.c.l.b16 %v173
    %v238 = vunpack.c.l.b16 %v174
    %v239 = vunpack.c.l.b16 %v175
    %v240 = vunpack.c.l.b16 %v176
    %v241 = vunpack.c.l.b16 %v177
    %v242 = vunpack.c.l.b16 %v178
    %v243 = vunpack.c.l.b16 %v179
    %v244 = vunpack.c.l.b16 %v180
    %v245 = vunpack.c.l.b16 %v181
    %v246 = vunpack.c.l.b16 %v182
    %v247 = vunpack.c.l.b16 %v183
    %v248 = vunpack.c.l.b16 %v184
    %v249 = vunpack.c.l.b16 %v185
    %v250 = vunpack.c.l.b16 %v186
    %v251 = vunpack.c.l.b16 %v187
    %v252 = vunpack.c.l.b16 %v188
    %v253 = vunpack.c.l.b16 %v189
    %v254 = vunpack.c.l.b16 %v190
    %v255 = vunpack.c.l.b16 %v191
    %v256 = vunpack.c.l.b16 %v192
    %v257 = vunpack.c.l.b16 %v193
    %v258 = vunpack.c.l.b16 %v194
    %v259 = vpack.c.b16 %v228, %v227
    %v260 = vpack.c.b16 %v230, %v229
    %v261 = vpack.c.b16 %v232, %v231
    %v262 = vpack.c.b16 %v234, %v233
    %v263 = vpack.c.b16 %v236, %v235
    %v264 = vpack.c.b16 %v238, %v237
    %v265 = vpack.c.b16 %v240, %v239
    %v266 = vpack.c.b16 %v242, %v241
    %v267 = vpack.c.b16 %v244, %v243
    %v268 = vpack.c.b16 %v246, %v245
    %v269 = vpack.c.b16 %v248, %v247
    %v270 = vpack.c.b16 %v250, %v249
    %v271 = vpack.c.b16 %v252, %v251
    %v272 = vpack.c.b16 %v254, %v253
    %v273 = vpack.c.b16 %v256, %v255
    %v274 = vpack.c.b16 %v258, %v257
    %291 = vmatpush.bf16.msra.mxu0 %v266
    %292 = vmatpush.bf16.msra.mxu0 %v265
    %293 = vmatpush.bf16.msra.mxu0 %v264
    %294 = vmatpush.bf16.msra.mxu0 %v263
    %295 = vmatpush.bf16.msra.mxu0 %v262
    %296 = vmatpush.bf16.msra.mxu0 %v261
    %297 = vmatpush.bf16.msra.mxu0 %v260
    %298 = vmatpush.bf16.msra.mxu0 %v259
    %299 = vmatmul.bf16.gmra.mxu0 %v161
    %v300 = vpop.f32.mrf.mxu0
    %v301 = vadd.f32 0.0, %v300
    %v302 = vpop.f32.mrf.mxu0
    %v303 = vadd.f32 0.0, %v302
    %304 = vdwg.mxu0
    %305 = vmatpush.bf16.msra.mxu0 %v274
    %306 = vmatpush.bf16.msra.mxu0 %v273
    %307 = vmatpush.bf16.msra.mxu0 %v272
    %308 = vmatpush.bf16.msra.mxu0 %v271
    %309 = vmatpush.bf16.msra.mxu0 %v270
    %310 = vmatpush.bf16.msra.mxu0 %v269
    %311 = vmatpush.bf16.msra.mxu0 %v268
    %312 = vmatpush.bf16.msra.mxu0 %v267
    %313 = vmatmul.bf16.gmra.mxu0 %v162
    %v314 = vpop.f32.mrf.mxu0
    %v315 = vadd.f32 %v301, %v314
    %v316 = vpop.f32.mrf.mxu0
    %v317 = vadd.f32 %v303, %v316
    %318 = vdwg.mxu0
    %v319 = vpack.c.bf16 %v315, %v315
    %v320 = vpack.c.bf16 %v317, %v317
    %v323 = vunpack.c.l.b16 %v319
    %v324 = vunpack.c.l.b16 %v320
    %v325 = vpack.c.b16 %v324, %v323
    %326 = vrot.lane.b32.xlu0 %v325, 122
    %v327 = vpop.permute.xlu0 %326
    %vm328 = vcmask 261120
    %v331 = vsel %vm328, %v325, %v327
    %333 = vrot.lane.b32.xlu0 %v325, 127
    %v334 = vpop.permute.xlu0 %333
    %335 = vrot.lane.b32.xlu0 %v325, 121
    %v336 = vpop.permute.xlu0 %335
    %v339 = vsel %vm328, %v334, %v336
    %341 = vrot.lane.b32.xlu0 %v325, 126
    %v342 = vpop.permute.xlu0 %341
    %343 = vrot.lane.b32.xlu0 %v325, 120
    %v344 = vpop.permute.xlu0 %343
    %v347 = vsel %vm328, %v342, %v344
    %349 = vrot.lane.b32.xlu0 %v325, 125
    %v350 = vpop.permute.xlu0 %349
    %351 = vrot.lane.b32.xlu0 %v325, 119
    %v352 = vpop.permute.xlu0 %351
    %v355 = vsel %vm328, %v350, %v352
    %357 = vrot.lane.b32.xlu0 %v325, 124
    %v358 = vpop.permute.xlu0 %357
    %359 = vrot.lane.b32.xlu0 %v325, 118
    %v360 = vpop.permute.xlu0 %359
    %v363 = vsel %vm328, %v358, %v360
    %365 = vrot.lane.b32.xlu0 %v325, 123
    %v366 = vpop.permute.xlu0 %365
    %367 = vrot.lane.b32.xlu0 %v325, 117
    %v368 = vpop.permute.xlu0 %367
    %v371 = vsel %vm328, %v366, %v368
    %373 = vrot.lane.b32.xlu0 %v325, 116
    %v374 = vpop.permute.xlu0 %373
    %v376 = vsel %vm328, %v327, %v374
    %379 = vset.pattern.permute.xlu0 112
    %380 = vperm.xlu0 %379, %v25
    %v381 = vpop.permute.xlu0 %380
    %384 = vset.pattern.permute.xlu0 112
    %385 = vperm.xlu0 %384, %v26
    %v386 = vpop.permute.xlu0 %385
    %v390 = vunpack.c.l.b16 %v23
    %v391 = vunpack.c.l.b16 %v24
    %v392 = vpack.c.b16 %v391, %v390
    %vm393 = vcmask 916480
    %v395 = vsel %vm393, %v392, 0
    %397 = vmatpush.bf16.msra.mxu0 0
    %398 = vmatpush.bf16.msra.mxu0 %v376
    %399 = vmatpush.bf16.msra.mxu0 %v371
    %400 = vmatpush.bf16.msra.mxu0 %v363
    %401 = vmatpush.bf16.msra.mxu0 %v355
    %402 = vmatpush.bf16.msra.mxu0 %v347
    %403 = vmatpush.bf16.msra.mxu0 %v339
    %404 = vmatpush.bf16.msra.mxu0 %v331
    %405 = vmatmul.bf16.gmra.mxu0 %v395
    %v406 = vpop.f32.mrf.mxu0
    %v407 = vadd.f32 %v381, %v406
    %v408 = vpop.f32.mrf.mxu0
    %v409 = vadd.f32 %v386, %v408
    %410 = vdwg.mxu0
    %vm411 = vcmp.gt.f32.partialorder %v407, 0.0
    %vm412 = vcmp.gt.f32.partialorder %v409, 0.0
    %v413 = vmin.f32 %v407, 0.0
    %v414 = vmin.f32 %v409, 0.0
    %v415 = vmul.f32 %v413, 1.442695
    %v416 = vpow.pop %v415
    %v417 = vmul.f32 %v414, 1.442695
    %v418 = vpow.pop %v417
    %v419 = vsub.f32 %v416, 1.0
    %v420 = vsub.f32 %v418, 1.0
    %v421 = vsel %vm411, %v407, %v419
    %v422 = vsel %vm412, %v409, %v420
    %v423 = vld [vmem:[%s3] sm:$0xff]
    %v424 = vld [vmem:[%s3 + $0x8] sm:$0xff]
    %v425 = vld [vmem:[%s3 + $0x10] sm:$0xff]
    %v426 = vld [vmem:[%s3 + $0x18] sm:$0xff]
    %v427 = vld [vmem:[%s3 + $0x20] sm:$0xff]
    %v428 = vld [vmem:[%s3 + $0x28] sm:$0xff]
    %v429 = vld [vmem:[%s3 + $0x30] sm:$0xff]
    %v430 = vld [vmem:[%s3 + $0x38] sm:$0xff]
    %v431 = vmul.f32 %v423, %v421
    %v432 = vmul.f32 %v424, %v422
    %v433 = vmul.f32 %v425, %v421
    %v434 = vmul.f32 %v426, %v422
    %v435 = vmul.f32 %v427, %v421
    %v436 = vmul.f32 %v428, %v422
    %v437 = vmul.f32 %v429, %v421
    %v438 = vmul.f32 %v430, %v422
    %v439 = vsel %vm328, %v431, 0.0
    %440 = vadd.xlane.f32.xlu0 %v439
    %v441 = vpop.xlane.xlu0 %440
    %v442 = vsel %vm328, %v432, 0.0
    %443 = vadd.xlane.f32.xlu0 %v442
    %v444 = vpop.xlane.xlu0 %443
    %v445 = vsel %vm328, %v433, 0.0
    %446 = vadd.xlane.f32.xlu0 %v445
    %v447 = vpop.xlane.xlu0 %446
    %v448 = vsel %vm328, %v434, 0.0
    %449 = vadd.xlane.f32.xlu0 %v448
    %v450 = vpop.xlane.xlu0 %449
    %v451 = vsel %vm328, %v435, 0.0
    %452 = vadd.xlane.f32.xlu0 %v451
    %v453 = vpop.xlane.xlu0 %452
    %v454 = vsel %vm328, %v436, 0.0
    %455 = vadd.xlane.f32.xlu0 %v454
    %v456 = vpop.xlane.xlu0 %455
    %v457 = vsel %vm328, %v437, 0.0
    %458 = vadd.xlane.f32.xlu0 %v457
    %v459 = vpop.xlane.xlu0 %458
    %v460 = vsel %vm328, %v438, 0.0
    %461 = vadd.xlane.f32.xlu0 %v460
    %v462 = vpop.xlane.xlu0 %461
    %v471 = vlaneseq
    %v472 = vand.u32 %v471, 127
    %v473 = vperm.slane %v441, %v472
    %v474 = vadd.s32 %v472, 4294967288
    %v475 = vperm.slane %v444, %v474
    %vm476 = vcmask 130112
    %v477 = vsel %vm476, %v475, %v473
    %v478 = vperm.slane %v447, %v472
    %v479 = vperm.slane %v450, %v474
    %v480 = vsel %vm476, %v479, %v478
    %v481 = vperm.slane %v453, %v472
    %v482 = vperm.slane %v456, %v474
    %v483 = vsel %vm476, %v482, %v481
    %v484 = vperm.slane %v459, %v472
    %v485 = vperm.slane %v462, %v474
    %v486 = vsel %vm476, %v485, %v484
    %vm487 = vcmask 1041409
    %v488 = vsel %vm487, %v480, %v477
    %vm489 = vcmask 1042434
    %v490 = vsel %vm489, %v483, %v488
    %vm491 = vcmask 1043459
    %v492 = vsel %vm491, %v486, %v490
    %vm494 = vcmask 125952
    %v495 = vsel %vm494, %v492, 0.0
    %496 = vadd.xlane.f32.xlu0 %v495
    %v497 = vpop.xlane.xlu0 %496
    %500 = vrot.lane.b32.xlu0 %v421, 96
    %v501 = vpop.permute.xlu0 %500
    %502 = vrot.lane.b32.xlu0 %v422, 96
    %v503 = vpop.permute.xlu0 %502
    %v506 = vmul.f32 %v423, %v501
    %v507 = vmul.f32 %v424, %v503
    %v508 = vmul.f32 %v425, %v501
    %v509 = vmul.f32 %v426, %v503
    %v510 = vmul.f32 %v427, %v501
    %v511 = vmul.f32 %v428, %v503
    %v512 = vmul.f32 %v429, %v501
    %v513 = vmul.f32 %v430, %v503
    %v514 = vsel %vm328, %v506, 0.0
    %515 = vadd.xlane.f32.xlu0 %v514
    %v516 = vpop.xlane.xlu0 %515
    %v517 = vsel %vm328, %v507, 0.0
    %518 = vadd.xlane.f32.xlu0 %v517
    %v519 = vpop.xlane.xlu0 %518
    %v520 = vsel %vm328, %v508, 0.0
    %521 = vadd.xlane.f32.xlu0 %v520
    %v522 = vpop.xlane.xlu0 %521
    %v523 = vsel %vm328, %v509, 0.0
    %524 = vadd.xlane.f32.xlu0 %v523
    %v525 = vpop.xlane.xlu0 %524
    %v526 = vsel %vm328, %v510, 0.0
    %527 = vadd.xlane.f32.xlu0 %v526
    %v528 = vpop.xlane.xlu0 %527
    %v529 = vsel %vm328, %v511, 0.0
    %530 = vadd.xlane.f32.xlu0 %v529
    %v531 = vpop.xlane.xlu0 %530
    %v532 = vsel %vm328, %v512, 0.0
    %533 = vadd.xlane.f32.xlu0 %v532
    %v534 = vpop.xlane.xlu0 %533
    %v535 = vsel %vm328, %v513, 0.0
    %536 = vadd.xlane.f32.xlu0 %v535
    %v537 = vpop.xlane.xlu0 %536
    %v546 = vperm.slane %v516, %v472
    %v547 = vperm.slane %v519, %v474
    %v548 = vsel %vm476, %v547, %v546
    %v549 = vperm.slane %v522, %v472
    %v550 = vperm.slane %v525, %v474
    %v551 = vsel %vm476, %v550, %v549
    %v552 = vperm.slane %v528, %v472
    %v553 = vperm.slane %v531, %v474
    %v554 = vsel %vm476, %v553, %v552
    %v555 = vperm.slane %v534, %v472
    %v556 = vperm.slane %v537, %v474
    %v557 = vsel %vm476, %v556, %v555
    %v558 = vsel %vm487, %v551, %v548
    %v559 = vsel %vm489, %v554, %v558
    %v560 = vsel %vm491, %v557, %v559
    %v562 = vsel %vm494, %v560, 0.0
    %563 = vadd.xlane.f32.xlu0 %v562
    %v564 = vpop.xlane.xlu0 %563
    %v566 = vperm.slane %v497, %v472
    %v569 = vperm.slane %v564, %v472
    %vm571 = vcmask 1040384
    %v572 = vsel %vm571, %v566, %v569
    %v573 = vperm.slane %v28, 0
    %575 = vrot.lane.b32.xlu0 %v573, 12
    %v576 = vpop.permute.xlu0 %575
    %v578 = vadd.f32 %v572, %v576
    %vm579 = vcmask 25600
    %v580 = vsel %vm579, %v578, -inf
    %581 = vmax.xlane.f32.xlu0 %v580
    %v582 = vpop.xlane.xlu0 %581
    %v583 = vsub.f32 %v578, %v582
    %v584 = vmul.f32 %v583, 1.442695
    %v585 = vpow.pop %v584
    %v586 = vsel %vm579, %v585, 0.0
    %587 = vadd.xlane.f32.xlu0 %v586
    %v588 = vpop.xlane.xlu0 %587
    %v589 = vlog2.pop %v588
    %v590 = vmul.f32 %v589, 0.6931472
    %v591 = vsub.f32 %v583, %v590
    %592 = vst.msk [vmem:[#allocation2] sm:$0x3] %vm579, %v591
    // Predicated region
    $region18: #{eegnet_forward.1} parent=1 // pred_check
      _
    $region19: #{eegnet_forward.1} parent=1 // pred_check_branch
      %594 = sbr.rel (0) target = $region21
    $region20: #{eegnet_forward.1} parent=1 // pred_region
      %596 = vsyncadd [#allocation3], 0
      %s598 = sshll.u32 [#allocation2], 4
      %s599 = int_to_ptr.vmem [resolvable:$true] %s598
      %s600 = sshll.u32 %s4, 4
      %s601 = int_to_ptr.hbm [resolvable:$true] %s600
      %603 = dma.vmem_to_hbm [thread:$0]  %s599, 32, %s601, [#allocation3]
    $region21: #{eegnet_forward.1} parent=1 // pred_fallthru
      _
    // Predicated region
    $region22: #{eegnet_forward.1} parent=1 // pred_check
      _
    $region23: #{eegnet_forward.1} parent=1 // pred_check_branch
      %605 = sbr.rel (0) target = $region25
    $region24: #{eegnet_forward.1} parent=1 // pred_region
      %607 = dma.done [#allocation3], 32
    $region25: #{eegnet_forward.1} parent=1 // pred_fallthru
      _
    %608 = vsyncpa [#allocation3], 1

</llo_original>
